<compile_context>
chip_gen: v7x
topology: tpu7x:2x2x1
jax: 0.10.0
libtpu: 0.0.40
codegen_flags: <defaults>
</compile_context>

<pallas_src>
import functools

import jax
import jax.numpy as jnp
from jax.experimental import pallas as pl
from jax.experimental.pallas import tpu as pltpu


# ---------------------------------------------------------------------------
# Kernel
# ---------------------------------------------------------------------------
def qnet_kernel(x_ref, w1_ref, b1_ref, w2_ref, b2_ref, w3_ref, b3_ref, o_ref,
                *, bf16_epilogue):
    # x tile: (TB, IN) bf16 (pre-cast in the wrapper).
    x = x_ref[...]

    # Layer 1: (TB, IN) @ (IN, H) -> f32 acc, bias add in f32.
    a1 = jnp.dot(x, w1_ref[...], preferred_element_type=jnp.float32) + b1_ref[...]
    if bf16_epilogue:
        # v6e/v7x: bf16 EUP -> ~2x tanh throughput; result already bf16 for MXU.
        h1 = jnp.tanh(a1.astype(jnp.bfloat16))
    else:
        # v5e and older: no bf16 VPU/EUP -> keep tanh in f32, cast after.
        h1 = jnp.tanh(a1).astype(jnp.bfloat16)

    # Layer 2: (TB, H) @ (H, H)
    a2 = jnp.dot(h1, w2_ref[...], preferred_element_type=jnp.float32) + b2_ref[...]
    if bf16_epilogue:
        h2 = jnp.tanh(a2.astype(jnp.bfloat16))
    else:
        h2 = jnp.tanh(a2).astype(jnp.bfloat16)

    # Output layer: (TB, H) @ (H, OUT2), no activation. OUT2 is the real column
    # count (no 128-wide padding -> 16x less output HBM traffic; f32 kept for
    # Q-value precision in double-DQN argmax/target math).
    o_ref[...] = (
        jnp.dot(h2, w3_ref[...], preferred_element_type=jnp.float32) + b3_ref[...]
    ).astype(o_ref.dtype)


# ---------------------------------------------------------------------------
# One-time parameter preparation (do this at init, NOT per forward call)
# ---------------------------------------------------------------------------
def _supports_bf16_epilogue():
    """bf16 VPU/EUP exists on v6e and newer; keep the f32 path on v5e and older."""
    try:
        kind = jax.devices()[0].device_kind.lower()
    except Exception:
        return False
    return not any(tag in kind for tag in ("v2", "v3", "v4", "v5"))


def prepare_qnet_params(w1, b1, w2, b2, w3, b3, *, bf16_epilogue=None):
    """Weights come in PyTorch layout (out, in); biases (out,).

    Returns kernel-ready params: weights transposed to (in, out) in bf16 for the
    MXU, biases as (1, out) f32. No output-column padding (the kernel stores the
    real columns directly).
    """
    if bf16_epilogue is None:
        bf16_epilogue = _supports_bf16_epilogue()

    w1_t = jnp.asarray(w1.T, jnp.bfloat16)            # (IN, H)
    w2_t = jnp.asarray(w2.T, jnp.bfloat16)            # (H, H)
    w3_t = jnp.asarray(w3.T, jnp.bfloat16)            # (H, OUT2)

    b1_2d = jnp.asarray(b1, jnp.float32)[None, :]     # (1, H)
    b2_2d = jnp.asarray(b2, jnp.float32)[None, :]     # (1, H)
    b3_2d = jnp.asarray(b3, jnp.float32)[None, :]     # (1, OUT2)

    return dict(w1=w1_t, b1=b1_2d, w2=w2_t, b2=b2_2d, w3=w3_t, b3=b3_2d,
                bf16_epilogue=bool(bf16_epilogue))


# ---------------------------------------------------------------------------
# Tiling choice
# ---------------------------------------------------------------------------
def _round_up(x, m):
    return ((x + m - 1) // m) * m


def _cdiv(a, b):
    return (a + b - 1) // b


def _choose_batch_tile(batch, *, tb_max=1024, gran=16):
    """Pick (tile, padded_batch).

    * gran=16 keeps sublane packing clean for bf16 activations.
    * For large batches: tiles up to tb_max (amortizes ~0.35us/step overhead,
      weights are only ~100 KB so VMEM is never the constraint).
    * For small batches: split into 2 balanced steps so both v7x TensorCores get
      work (neutral on single-TC v5e/v6e).
    """
    b = _round_up(max(batch, 1), gran)
    n_steps = _cdiv(b, tb_max)
    if n_steps == 1 and b >= 2 * gran:
        n_steps = 2
    tb = _round_up(_cdiv(b, n_steps), gran)
    bp = n_steps * tb
    return tb, bp


# ---------------------------------------------------------------------------
# Forward wrapper
# ---------------------------------------------------------------------------
@functools.partial(jax.jit, static_argnames=("tb", "bp", "bf16_epilogue"))
def _qnet_forward_impl(x, w1, b1, w2, b2, w3, b3, *, tb, bp, bf16_epilogue):
    B, in_size = x.shape
    H = w1.shape[1]
    out2 = w3.shape[1]

    # Pre-cast to bf16 (halves activation DMA, removes per-tile cast) and pad
    # the batch only up to the chosen tile multiple.
    xp = x.astype(jnp.bfloat16)
    if bp != B:
        xp = jnp.pad(xp, ((0, bp - B), (0, 0)))

    flops = 2 * bp * (in_size * H + H * H + H * out2)
    transcendentals = 2 * bp * H
    bytes_accessed = (bp * in_size * 2 + bp * out2 * 4
                      + (in_size * H + H * H + H * out2) * 2
                      + (2 * H + out2) * 4)

    kernel = functools.partial(qnet_kernel, bf16_epilogue=bf16_epilogue)

    out = pl.pallas_call(
        kernel,
        out_shape=jax.ShapeDtypeStruct((bp, out2), jnp.float32),
        grid_spec=pl.GridSpec(
            grid=(bp // tb,),
            in_specs=[
                # Activation stream: one batch tile per grid step (double-buffered).
                pl.BlockSpec((tb, in_size), lambda i: (i, 0)),
                # Weights / biases: same block every step -> stay resident in VMEM.
                pl.BlockSpec((in_size, H), lambda i: (0, 0)),
                pl.BlockSpec((1, H), lambda i: (0, 0)),
                pl.BlockSpec((H, H), lambda i: (0, 0)),
                pl.BlockSpec((1, H), lambda i: (0, 0)),
                pl.BlockSpec((H, out2), lambda i: (0, 0)),
                pl.BlockSpec((1, out2), lambda i: (0, 0)),
            ],
            out_specs=pl.BlockSpec((tb, out2), lambda i: (i, 0)),
        ),
        compiler_params=pltpu.CompilerParams(
            dimension_semantics=("parallel",),   # megacore sharding on v7x
        ),
        cost_estimate=pl.CostEstimate(
            flops=flops,
            transcendentals=transcendentals,
            bytes_accessed=bytes_accessed,
        ),
    )(xp, w1, b1, w2, b2, w3, b3)

    if bp != B:
        out = out[:B]   # contiguous row-prefix slice only; no column slab copy
    return out


def qnet_forward(x, params, *, tb_max=1024):
    """x: (B, input_size) f32. params: output of prepare_qnet_params."""
    tb, bp = _choose_batch_tile(x.shape[0], tb_max=tb_max)
    return _qnet_forward_impl(
        x, params["w1"], params["b1"], params["w2"], params["b2"],
        params["w3"], params["b3"],
        tb=tb, bp=bp, bf16_epilogue=params["bf16_epilogue"],
    )


# ---------------------------------------------------------------------------
# References & init
# ---------------------------------------------------------------------------
def qnet_reference_f32(x, w1, b1, w2, b2, w3, b3):
    h1 = jnp.tanh(x @ w1.T + b1)
    h2 = jnp.tanh(h1 @ w2.T + b2)
    return h2 @ w3.T + b3


def qnet_reference_matched(x, w1, b1, w2, b2, w3, b3, bf16_epilogue):
    """Mirrors the kernel's dtype strategy (bf16 MXU operands, f32 accum)."""
    bf = jnp.bfloat16
    a1 = jnp.dot(x.astype(bf), w1.T.astype(bf),
                 preferred_element_type=jnp.float32) + b1
    h1 = jnp.tanh(a1.astype(bf)) if bf16_epilogue else jnp.tanh(a1).astype(bf)
    a2 = jnp.dot(h1, w2.T.astype(bf),
                 preferred_element_type=jnp.float32) + b2
    h2 = jnp.tanh(a2.astype(bf)) if bf16_epilogue else jnp.tanh(a2).astype(bf)
    return jnp.dot(h2, w3.T.astype(bf),
                   preferred_element_type=jnp.float32) + b3


def init_linear(key, out_features, in_features):
    # Deterministic init mimicking PyTorch's Linear default (uniform +-1/sqrt(in)).
    kw, kb = jax.random.split(key)
    bound = 1.0 / jnp.sqrt(in_features)
    w = jax.random.uniform(kw, (out_features, in_features), jnp.float32, -bound, bound)
    b = jax.random.uniform(kb, (out_features,), jnp.float32, -bound, bound)
    return w, b


if __name__ == "__main__":
    # Small shapes consistent with the module: input_size=16, hidden=128 (module
    # default), output_size=4 -> 8 output columns. batch=20 exercises padding and
    # the 2-step adaptive grid.
    input_size = 16
    hidden_size = 128
    output_size = 4  # output layer produces output_size * 2 = 8 values

    key = jax.random.PRNGKey(0)
    kx, k1, k2, k3 = jax.random.split(key, 4)

    w1, b1 = init_linear(k1, hidden_size, input_size)
    w2, b2 = init_linear(k2, hidden_size, hidden_size)
    w3, b3 = init_linear(k3, output_size * 2, hidden_size)

    params = prepare_qnet_params(w1, b1, w2, b2, w3, b3)

    for batch in (20, 200):
        x = jax.random.normal(kx, (batch, input_size), jnp.float32)

        out = qnet_forward(x, params)
        out = jax.block_until_ready(out)
        assert out.shape == (batch, output_size * 2), out.shape

        # Check against a reference using the same bf16-operand / f32-accum math.
        ref_matched = qnet_reference_matched(
            x, w1, b1, w2, b2, w3, b3, params["bf16_epilogue"])
        err_tight = float(jnp.max(jnp.abs(out - ref_matched)))
        assert err_tight < 2.5e-2, err_tight

        # Loose sanity check against the pure-f32 PyTorch-equivalent math.
        ref_f32 = qnet_reference_f32(x, w1, b1, w2, b2, w3, b3)
        err_loose = float(jnp.max(jnp.abs(out - ref_f32)))
        assert err_loose < 1e-1, err_loose

    print("KERNEL_OK")
</pallas_src>

<mosaic_0001>
module attributes {stable_mosaic.version = 11 : i64} {
  func.func @qnet_kernel(%arg0: i32, %arg1: memref<16x16xbf16, #tpu.memory_space<vmem>>, %arg2: memref<16x128xbf16, #tpu.memory_space<vmem>>, %arg3: memref<1x128xf32, #tpu.memory_space<vmem>>, %arg4: memref<128x128xbf16, #tpu.memory_space<vmem>>, %arg5: memref<1x128xf32, #tpu.memory_space<vmem>>, %arg6: memref<128x8xbf16, #tpu.memory_space<vmem>>, %arg7: memref<1x8xf32, #tpu.memory_space<vmem>>, %arg8: memref<16x8xf32, #tpu.memory_space<vmem>>) attributes {dimension_semantics = [#tpu.dimension_semantics<parallel>], iteration_bounds = array<i64: 2>, scalar_prefetch = 0 : i64, scratch_operands = 0 : i64, tpu.core_type = #tpu.core_type<tc>, window_params = [{transform_indices = @transform_0, window_bounds = array<i64: 16, 16>}, {pipeline_mode = #tpu.pipeline_mode<synchronous>, transform_indices = @transform_1, window_bounds = array<i64: 16, 128>}, {pipeline_mode = #tpu.pipeline_mode<synchronous>, transform_indices = @transform_2, window_bounds = array<i64: 1, 128>}, {pipeline_mode = #tpu.pipeline_mode<synchronous>, transform_indices = @transform_3, window_bounds = array<i64: 128, 128>}, {pipeline_mode = #tpu.pipeline_mode<synchronous>, transform_indices = @transform_4, window_bounds = array<i64: 1, 128>}, {pipeline_mode = #tpu.pipeline_mode<synchronous>, transform_indices = @transform_5, window_bounds = array<i64: 128, 8>}, {pipeline_mode = #tpu.pipeline_mode<synchronous>, transform_indices = @transform_6, window_bounds = array<i64: 1, 8>}, {transform_indices = @transform_7, window_bounds = array<i64: 16, 8>}]} {
    %c0 = arith.constant 0 : index
    %c0_0 = arith.constant 0 : index
    %0 = vector.load %arg1[%c0, %c0_0] : memref<16x16xbf16, #tpu.memory_space<vmem>>, vector<16x16xbf16>
    %c0_1 = arith.constant 0 : index
    %c0_2 = arith.constant 0 : index
    %1 = vector.load %arg2[%c0_1, %c0_2] : memref<16x128xbf16, #tpu.memory_space<vmem>>, vector<16x128xbf16>
    %cst = arith.constant dense<0.000000e+00> : vector<16x128xf32>
    %2 = tpu.matmul %0, %1, %cst {dimension_numbers = #tpu.dot_dimension_numbers<[1], [0], [0], [1], [0, 0, 1, 1], [], []>} : vector<16x16xbf16>, vector<16x128xbf16>, vector<16x128xf32> -> vector<16x128xf32>
    %c0_3 = arith.constant 0 : index
    %c0_4 = arith.constant 0 : index
    %3 = vector.load %arg3[%c0_3, %c0_4] : memref<1x128xf32, #tpu.memory_space<vmem>>, vector<1x128xf32>
    %4 = vector.broadcast %3 : vector<1x128xf32> to vector<16x128xf32>
    %5 = arith.addf %2, %4 : vector<16x128xf32>
    %6 = arith.truncf %5 : vector<16x128xf32> to vector<16x128xbf16>
    %7 = math.tanh %6 : vector<16x128xbf16>
    %c0_5 = arith.constant 0 : index
    %c0_6 = arith.constant 0 : index
    %8 = vector.load %arg4[%c0_5, %c0_6] : memref<128x128xbf16, #tpu.memory_space<vmem>>, vector<128x128xbf16>
    %cst_7 = arith.constant dense<0.000000e+00> : vector<16x128xf32>
    %9 = tpu.matmul %7, %8, %cst_7 {dimension_numbers = #tpu.dot_dimension_numbers<[1], [0], [0], [1], [0, 0, 1, 1], [], []>} : vector<16x128xbf16>, vector<128x128xbf16>, vector<16x128xf32> -> vector<16x128xf32>
    %c0_8 = arith.constant 0 : index
    %c0_9 = arith.constant 0 : index
    %10 = vector.load %arg5[%c0_8, %c0_9] : memref<1x128xf32, #tpu.memory_space<vmem>>, vector<1x128xf32>
    %11 = vector.broadcast %10 : vector<1x128xf32> to vector<16x128xf32>
    %12 = arith.addf %9, %11 : vector<16x128xf32>
    %13 = arith.truncf %12 : vector<16x128xf32> to vector<16x128xbf16>
    %14 = math.tanh %13 : vector<16x128xbf16>
    %c0_10 = arith.constant 0 : index
    %c0_11 = arith.constant 0 : index
    %15 = vector.load %arg6[%c0_10, %c0_11] : memref<128x8xbf16, #tpu.memory_space<vmem>>, vector<128x8xbf16>
    %cst_12 = arith.constant dense<0.000000e+00> : vector<16x8xf32>
    %16 = tpu.matmul %14, %15, %cst_12 {dimension_numbers = #tpu.dot_dimension_numbers<[1], [0], [0], [1], [0, 0, 1, 1], [], []>} : vector<16x128xbf16>, vector<128x8xbf16>, vector<16x8xf32> -> vector<16x8xf32>
    %c0_13 = arith.constant 0 : index
    %c0_14 = arith.constant 0 : index
    %17 = vector.load %arg7[%c0_13, %c0_14] : memref<1x8xf32, #tpu.memory_space<vmem>>, vector<1x8xf32>
    %18 = vector.broadcast %17 : vector<1x8xf32> to vector<16x8xf32>
    %19 = arith.addf %16, %18 : vector<16x8xf32>
    %c0_15 = arith.constant 0 : index
    %c0_16 = arith.constant 0 : index
    %20 = vector.load %arg8[%c0_15, %c0_16] : memref<16x8xf32, #tpu.memory_space<vmem>>, vector<16x8xf32>
    tpu.vector_store %arg8[%c0_15, %c0_16], %19 {strides = array<i32>} : memref<16x8xf32, #tpu.memory_space<vmem>>, vector<16x8xf32>,
    return
  }
  func.func @transform_0(%arg0: i32) -> (i32, i32) {
    %c0_i32 = arith.constant 0 : i32
    %c0_i32_0 = arith.constant 0 : i32
    return %arg0, %c0_i32 : i32, i32
  }
  func.func @transform_1(%arg0: i32) -> (i32, i32) {
    %c0_i32 = arith.constant 0 : i32
    %c0_i32_0 = arith.constant 0 : i32
    %c0_i32_1 = arith.constant 0 : i32
    return %c0_i32, %c0_i32_0 : i32, i32
  }
  func.func @transform_2(%arg0: i32) -> (i32, i32) {
    %c0_i32 = arith.constant 0 : i32
    %c0_i32_0 = arith.constant 0 : i32
    %c0_i32_1 = arith.constant 0 : i32
    return %c0_i32, %c0_i32_0 : i32, i32
  }
  func.func @transform_3(%arg0: i32) -> (i32, i32) {
    %c0_i32 = arith.constant 0 : i32
    %c0_i32_0 = arith.constant 0 : i32
    %c0_i32_1 = arith.constant 0 : i32
    return %c0_i32, %c0_i32_0 : i32, i32
  }
  func.func @transform_4(%arg0: i32) -> (i32, i32) {
    %c0_i32 = arith.constant 0 : i32
    %c0_i32_0 = arith.constant 0 : i32
    %c0_i32_1 = arith.constant 0 : i32
    return %c0_i32, %c0_i32_0 : i32, i32
  }
  func.func @transform_5(%arg0: i32) -> (i32, i32) {
    %c0_i32 = arith.constant 0 : i32
    %c0_i32_0 = arith.constant 0 : i32
    %c0_i32_1 = arith.constant 0 : i32
    return %c0_i32, %c0_i32_0 : i32, i32
  }
  func.func @transform_6(%arg0: i32) -> (i32, i32) {
    %c0_i32 = arith.constant 0 : i32
    %c0_i32_0 = arith.constant 0 : i32
    %c0_i32_1 = arith.constant 0 : i32
    return %c0_i32, %c0_i32_0 : i32, i32
  }
  func.func @transform_7(%arg0: i32) -> (i32, i32) {
    %c0_i32 = arith.constant 0 : i32
    %c0_i32_0 = arith.constant 0 : i32
    return %arg0, %c0_i32 : i32, i32
  }
}

</mosaic_0001>

<llo_original>
// kernel: _qnet_forward_impl.1
$region0: #{_qnet_forward_impl.1}
  #allocation0 [shape = 'u32[]', space=smem, size = 0x4, offset = 0x4, fixed_abs, tag = 'smem constant byte address 0x4 - core index']
  #allocation1 [shape = 'u32[144,128]{1,0:T(1,128)}', space=vmem, size = 0x12000, scoped, tag = 'internal scratch']
  %s0 = inlined_call_operand.vmem [shape: bf16[32,16], index: 0, kind: input, shape index: {}]
  %s1 = inlined_call_operand.vmem [shape: bf16[16,128], index: 1, kind: input, shape index: {}]
  %s2 = inlined_call_operand.vmem [shape: f32[1,128], index: 2, kind: input, shape index: {}]
  %s3 = inlined_call_operand.vmem [shape: bf16[128,128], index: 3, kind: input, shape index: {}]
  %s4 = inlined_call_operand.vmem [shape: f32[1,128], index: 4, kind: input, shape index: {}]
  %s5 = inlined_call_operand.vmem [shape: bf16[128,8], index: 5, kind: input, shape index: {}]
  %s6 = inlined_call_operand.vmem [shape: f32[1,8], index: 6, kind: input, shape index: {}]
  %s7 = inlined_call_operand.vmem [shape: f32[32,8], index: 7, kind: output, shape index: {}]
  %s8 = sld [smem:[#allocation0]]
  $region61: #{_qnet_forward_impl.1} parent=0
    _
  %s10 = ssub.s32 1, %s8
  %s11 = scalar_select 0, %s10, %s8
  loop: start=0, step=1, limit=4
  $region2: #{_qnet_forward_impl.1} parent=0 // loop_pre_header
    _
  $region3: #{_qnet_forward_impl.1} parent=0 // loop_header
    %s13 = sphi 0, %s17
    %p14 = scmp.ge.s32.totalorder %s13, 4
    %s23 = sphi 0, %s25
    %s26 = sphi 0, %s23
    %s27 = sphi 0, %s26
    %s43 = sphi 0, %s27
    %s47 = sphi 0, %s47
    %s49 = sphi 0, %s47
    %s50 = sphi 0, %s49
    %s64 = sphi 0, %s50
    %s68 = sphi 0, %s68
    %s70 = sphi 0, %s68
    %s71 = sphi 0, %s70
    %s85 = sphi 0, %s71
    %s89 = sphi 0, %s89
    %s91 = sphi 0, %s89
    %s92 = sphi 0, %s91
    %s106 = sphi 0, %s92
    %s110 = sphi 0, %s110
    %s112 = sphi 0, %s110
    %s113 = sphi 0, %s112
    %s127 = sphi 0, %s113
    %s131 = sphi 0, %s131
    %s133 = sphi 0, %s131
    %s134 = sphi 0, %s133
    %s148 = sphi 0, %s134
    %s152 = sphi 0, %s152
    %s154 = sphi 0, %s152
    %s155 = sphi 0, %s154
    %s169 = sphi 0, %s155
    %s175 = sphi 0, %s177
    %s178 = sphi 0, %s175
    %s179 = sphi 0, %s178
    %s195 = sphi 0, %s179
  $region4: #{_qnet_forward_impl.1} parent=0 // loop_header_branch
    %16 = sbr.rel (%p14) target = $region8
  $region5: #{_qnet_forward_impl.1} parent=0 // loop_body
    %s18 = ssub.s32 %s13, 1
    %s19 = ssub.s32 %s13, 2
    %s20 = sadd.s32 %s13, 1
    %s21 = ssub.s32 %s13, %s20
    %p22 = scmp.eq.s32.totalorder %s21, 0
    %s24 = sadd.s32 %s23, 1
    %s25 = scalar_select %p22, %s23, %s24
    %p28 = pneg %p22
    %p29 = scmp.eq.s32.totalorder %s13, 1
    %p30 = por %p28, %p29
    %p31 = scmp.ne.s32.totalorder %s23, %s26
    %p32 = scmp.eq.s32.totalorder %s13, 0
    %p33 = por %p31, %p32
    %p34 = scmp.ne.s32.totalorder %s23, %s26
    %p35 = scmp.eq.s32.totalorder %s18, 1
    %p36 = por %p34, %p35
    %p37 = scmp.ne.s32.totalorder %s26, %s27
    %p38 = scmp.eq.s32.totalorder %s18, 0
    %p39 = por %p37, %p38
    %p40 = scmp.ne.s32.totalorder %s26, %s27
    %p41 = scmp.eq.s32.totalorder %s19, 1
    %p42 = por %p40, %p41
    %p44 = scmp.ne.s32.totalorder %s27, %s43
    %p45 = scmp.eq.s32.totalorder %s19, 0
    %p46 = por %p44, %p45
    %s48 = sadd.s32 %s47, 1
    %p51 = scmp.eq.s32.totalorder %s13, 1
    %p52 = scmp.ne.s32.totalorder %s47, %s49
    %p53 = scmp.eq.s32.totalorder %s13, 0
    %p54 = por %p52, %p53
    %p55 = scmp.ne.s32.totalorder %s47, %s49
    %p56 = scmp.eq.s32.totalorder %s18, 1
    %p57 = por %p55, %p56
    %p58 = scmp.ne.s32.totalorder %s49, %s50
    %p59 = scmp.eq.s32.totalorder %s18, 0
    %p60 = por %p58, %p59
    %p61 = scmp.ne.s32.totalorder %s49, %s50
    %p62 = scmp.eq.s32.totalorder %s19, 1
    %p63 = por %p61, %p62
    %p65 = scmp.ne.s32.totalorder %s50, %s64
    %p66 = scmp.eq.s32.totalorder %s19, 0
    %p67 = por %p65, %p66
    %s69 = sadd.s32 %s68, 1
    %p72 = scmp.eq.s32.totalorder %s13, 1
    %p73 = scmp.ne.s32.totalorder %s68, %s70
    %p74 = scmp.eq.s32.totalorder %s13, 0
    %p75 = por %p73, %p74
    %p76 = scmp.ne.s32.totalorder %s68, %s70
    %p77 = scmp.eq.s32.totalorder %s18, 1
    %p78 = por %p76, %p77
    %p79 = scmp.ne.s32.totalorder %s70, %s71
    %p80 = scmp.eq.s32.totalorder %s18, 0
    %p81 = por %p79, %p80
    %p82 = scmp.ne.s32.totalorder %s70, %s71
    %p83 = scmp.eq.s32.totalorder %s19, 1
    %p84 = por %p82, %p83
    %p86 = scmp.ne.s32.totalorder %s71, %s85
    %p87 = scmp.eq.s32.totalorder %s19, 0
    %p88 = por %p86, %p87
    %s90 = sadd.s32 %s89, 1
    %p93 = scmp.eq.s32.totalorder %s13, 1
    %p94 = scmp.ne.s32.totalorder %s89, %s91
    %p95 = scmp.eq.s32.totalorder %s13, 0
    %p96 = por %p94, %p95
    %p97 = scmp.ne.s32.totalorder %s89, %s91
    %p98 = scmp.eq.s32.totalorder %s18, 1
    %p99 = por %p97, %p98
    %p100 = scmp.ne.s32.totalorder %s91, %s92
    %p101 = scmp.eq.s32.totalorder %s18, 0
    %p102 = por %p100, %p101
    %p103 = scmp.ne.s32.totalorder %s91, %s92
    %p104 = scmp.eq.s32.totalorder %s19, 1
    %p105 = por %p103, %p104
    %p107 = scmp.ne.s32.totalorder %s92, %s106
    %p108 = scmp.eq.s32.totalorder %s19, 0
    %p109 = por %p107, %p108
    %s111 = sadd.s32 %s110, 1
    %p114 = scmp.eq.s32.totalorder %s13, 1
    %p115 = scmp.ne.s32.totalorder %s110, %s112
    %p116 = scmp.eq.s32.totalorder %s13, 0
    %p117 = por %p115, %p116
    %p118 = scmp.ne.s32.totalorder %s110, %s112
    %p119 = scmp.eq.s32.totalorder %s18, 1
    %p120 = por %p118, %p119
    %p121 = scmp.ne.s32.totalorder %s112, %s113
    %p122 = scmp.eq.s32.totalorder %s18, 0
    %p123 = por %p121, %p122
    %p124 = scmp.ne.s32.totalorder %s112, %s113
    %p125 = scmp.eq.s32.totalorder %s19, 1
    %p126 = por %p124, %p125
    %p128 = scmp.ne.s32.totalorder %s113, %s127
    %p129 = scmp.eq.s32.totalorder %s19, 0
    %p130 = por %p128, %p129
    %s132 = sadd.s32 %s131, 1
    %p135 = scmp.eq.s32.totalorder %s13, 1
    %p136 = scmp.ne.s32.totalorder %s131, %s133
    %p137 = scmp.eq.s32.totalorder %s13, 0
    %p138 = por %p136, %p137
    %p139 = scmp.ne.s32.totalorder %s131, %s133
    %p140 = scmp.eq.s32.totalorder %s18, 1
    %p141 = por %p139, %p140
    %p142 = scmp.ne.s32.totalorder %s133, %s134
    %p143 = scmp.eq.s32.totalorder %s18, 0
    %p144 = por %p142, %p143
    %p145 = scmp.ne.s32.totalorder %s133, %s134
    %p146 = scmp.eq.s32.totalorder %s19, 1
    %p147 = por %p145, %p146
    %p149 = scmp.ne.s32.totalorder %s134, %s148
    %p150 = scmp.eq.s32.totalorder %s19, 0
    %p151 = por %p149, %p150
    %s153 = sadd.s32 %s152, 1
    %p156 = scmp.eq.s32.totalorder %s13, 1
    %p157 = scmp.ne.s32.totalorder %s152, %s154
    %p158 = scmp.eq.s32.totalorder %s13, 0
    %p159 = por %p157, %p158
    %p160 = scmp.ne.s32.totalorder %s152, %s154
    %p161 = scmp.eq.s32.totalorder %s18, 1
    %p162 = por %p160, %p161
    %p163 = scmp.ne.s32.totalorder %s154, %s155
    %p164 = scmp.eq.s32.totalorder %s18, 0
    %p165 = por %p163, %p164
    %p166 = scmp.ne.s32.totalorder %s154, %s155
    %p167 = scmp.eq.s32.totalorder %s19, 1
    %p168 = por %p166, %p167
    %p170 = scmp.ne.s32.totalorder %s155, %s169
    %p171 = scmp.eq.s32.totalorder %s19, 0
    %p172 = por %p170, %p171
    %s173 = ssub.s32 %s13, %s20
    %p174 = scmp.eq.s32.totalorder %s173, 0
    %s176 = sadd.s32 %s175, 1
    %s177 = scalar_select %p174, %s175, %s176
    %p180 = pneg %p174
    %p181 = scmp.eq.s32.totalorder %s13, 1
    %p182 = por %p180, %p181
    %p183 = scmp.ne.s32.totalorder %s175, %s178
    %p184 = scmp.eq.s32.totalorder %s13, 0
    %p185 = por %p183, %p184
    %p186 = scmp.ne.s32.totalorder %s175, %s178
    %p187 = scmp.eq.s32.totalorder %s18, 1
    %p188 = por %p186, %p187
    %p189 = scmp.ne.s32.totalorder %s178, %s179
    %p190 = scmp.eq.s32.totalorder %s18, 0
    %p191 = por %p189, %p190
    %p192 = scmp.ne.s32.totalorder %s178, %s179
    %p193 = scmp.eq.s32.totalorder %s19, 1
    %p194 = por %p192, %p193
    %p196 = scmp.ne.s32.totalorder %s179, %s195
    %p197 = scmp.eq.s32.totalorder %s19, 0
    %p198 = por %p196, %p197
    %p199 = scmp.le.s32.totalorder 1, %s13
    %p200 = scmp.lt.s32.totalorder %s13, 3
    %p201 = pnand %p199, %p200
    %p202 = pneg %p201
    // Predicated region
    $region9: #{_qnet_forward_impl.1} parent=5 // pred_check
      _
    $region10: #{_qnet_forward_impl.1} parent=5 // pred_check_branch
      %204 = sbr.rel (%p201) target = $region12
    $region11: #{_qnet_forward_impl.1} parent=5 // pred_region
      %s205 = ssub.s32 %s13, 1
      // Predicated region
      $region13: #{_qnet_forward_impl.1} parent=11 // pred_check
        %p206 = pneg %p60
      $region14: #{_qnet_forward_impl.1} parent=11 // pred_check_branch
        %208 = sbr.rel (%p206) target = $region16
      $region15: #{_qnet_forward_impl.1} parent=11 // pred_region
        _
      $region16: #{_qnet_forward_impl.1} parent=11 // pred_fallthru
        _
      // Predicated region
      $region17: #{_qnet_forward_impl.1} parent=11 // pred_check
        %p209 = pneg %p81
      $region18: #{_qnet_forward_impl.1} parent=11 // pred_check_branch
        %211 = sbr.rel (%p209) target = $region20
      $region19: #{_qnet_forward_impl.1} parent=11 // pred_region
        _
      $region20: #{_qnet_forward_impl.1} parent=11 // pred_fallthru
        _
      // Predicated region
      $region21: #{_qnet_forward_impl.1} parent=11 // pred_check
        %p212 = pneg %p102
      $region22: #{_qnet_forward_impl.1} parent=11 // pred_check_branch
        %214 = sbr.rel (%p212) target = $region24
      $region23: #{_qnet_forward_impl.1} parent=11 // pred_region
        _
      $region24: #{_qnet_forward_impl.1} parent=11 // pred_fallthru
        _
      // Predicated region
      $region25: #{_qnet_forward_impl.1} parent=11 // pred_check
        %p215 = pneg %p123
      $region26: #{_qnet_forward_impl.1} parent=11 // pred_check_branch
        %217 = sbr.rel (%p215) target = $region28
      $region27: #{_qnet_forward_impl.1} parent=11 // pred_region
        _
      $region28: #{_qnet_forward_impl.1} parent=11 // pred_fallthru
        _
      // Predicated region
      $region29: #{_qnet_forward_impl.1} parent=11 // pred_check
        %p218 = pneg %p144
      $region30: #{_qnet_forward_impl.1} parent=11 // pred_check_branch
        %220 = sbr.rel (%p218) target = $region32
      $region31: #{_qnet_forward_impl.1} parent=11 // pred_region
        _
      $region32: #{_qnet_forward_impl.1} parent=11 // pred_fallthru
        _
      // Predicated region
      $region33: #{_qnet_forward_impl.1} parent=11 // pred_check
        %p221 = pneg %p165
      $region34: #{_qnet_forward_impl.1} parent=11 // pred_check_branch
        %223 = sbr.rel (%p221) target = $region36
      $region35: #{_qnet_forward_impl.1} parent=11 // pred_region
        _
      $region36: #{_qnet_forward_impl.1} parent=11 // pred_fallthru
        _
    $region12: #{_qnet_forward_impl.1} parent=5 // pred_fallthru
      _
    %p224 = scmp.lt.s32.totalorder %s13, 2
    // Predicated region
    $region37: #{_qnet_forward_impl.1} parent=5 // pred_check
      %p225 = pneg %p224
    $region38: #{_qnet_forward_impl.1} parent=5 // pred_check_branch
      %227 = sbr.rel (%p225) target = $region40
    $region39: #{_qnet_forward_impl.1} parent=5 // pred_region
      // Predicated region
      $region41: #{_qnet_forward_impl.1} parent=39 // pred_check
        %p228 = pneg %p33
      $region42: #{_qnet_forward_impl.1} parent=39 // pred_check_branch
        %230 = sbr.rel (%p228) target = $region44
      $region43: #{_qnet_forward_impl.1} parent=39 // pred_region
        %s231 = smul.u32 2, %s13
        %p232 = scmp.lt.s32.totalorder %s231, 3
        %s233 = scalar_select %p232, %s231, 3
        %s234 = smul.addr %s233, 4
        %s235 = scalar_lea.vmem %s0, %s234
        %s236 = smul.u32 2, %s13
      $region44: #{_qnet_forward_impl.1} parent=39 // pred_fallthru
        _
    $region40: #{_qnet_forward_impl.1} parent=5 // pred_fallthru
      _
    %p237 = scmp.le.s32.totalorder 1, %s13
    %p238 = scmp.lt.s32.totalorder %s13, 3
    %p239 = pnand %p237, %p238
    %p240 = pneg %p239
    // Predicated region
    $region45: #{_qnet_forward_impl.1} parent=5 // pred_check
      _
    $region46: #{_qnet_forward_impl.1} parent=5 // pred_check_branch
      %242 = sbr.rel (%p239) target = $region48
    $region47: #{_qnet_forward_impl.1} parent=5 // pred_region
      %s243 = ssub.s32 %s13, 1
      %s244 = smul.u32 2, %s18
      %p245 = scmp.lt.s32.totalorder %s244, 3
      %s246 = scalar_select %p245, %s244, 3
      %s247 = smul.addr %s246, 4
      %s248 = scalar_lea.vmem %s0, %s247
      %p249 = pneg %p39
      %p250 = pneg %p36
      %p251 = pneg %p60
      %p252 = pneg %p57
      %p253 = pneg %p81
      %p254 = pneg %p78
      %p255 = pneg %p102
      %p256 = pneg %p99
      %p257 = pneg %p123
      %p258 = pneg %p120
      %p259 = pneg %p144
      %p260 = pneg %p141
      %p261 = pneg %p165
      %p262 = pneg %p162
      %p263 = pneg %p191
      %p264 = pneg %p188
      %s265 = smul.u32 2, %s18
      %p266 = scmp.lt.s32.totalorder %s265, 3
      %s267 = scalar_select %p266, %s265, 3
      %s268 = smul.addr %s267, 8
      %s269 = scalar_lea.vmem %s7, %s268
      %s270 = smul.u32 2, %s18
      %p271 = scmp.lt.s32.totalorder %s270, 3
      %s272 = scalar_select %p271, %s270, 3
      %s273 = smul.addr %s272, 4
      %s274 = scalar_lea.vmem %s0, %s273
      %s275 = smul.u32 2, %s18
      %s276 = smul.u32 2, %s18
      %p277 = scmp.lt.s32.totalorder %s276, 3
      %s278 = scalar_select %p277, %s276, 3
      %s279 = smul.addr %s278, 8
      %s280 = scalar_lea.vmem %s7, %s279
      %s281 = smul.u32 2, %s18
      %v283 = vld [vmem:[%s274] sm:$0xf]
      %v284 = vld [vmem:[%s274 + $0x4] sm:$0xf]
      %v285 = vld [vmem:[%s1] sm:$0xf]
      %v286 = vld [vmem:[%s1 + $0x4] sm:$0xf]
      %v287 = vld [vmem:[%s2] sm:$0x1]
      %v289 = vlaneseq
      %v290 = vshrl.u32 %v289, 7
      %v291 = vsub.s32 0, %v290
      %v292 = vrot.slane %v287, %v291
      %v296 = vunpack.c.l.b16 %v283
      %v297 = vunpack.c.l.b16 %v284
      %v298 = vpack.c.b16 %v297, %v296
      %v301 = vunpack.c.l.b16 %v285
      %v302 = vunpack.c.l.b16 %v286
      %v303 = vpack.c.b16 %v302, %v301
      %vm305 = vcmask 130048
      %v307 = vsel %vm305, %v298, 0
      %309 = vmatprep.subr.bf16.mxu0 0
      %310 = vmatpush1.bf16.msra.mxu0 %v303
      %311 = vmatprep.subr.bf16.mxu0 0
      %312 = vmatpush1.bf16.msra.mxu0 0
      %313 = vmatprep.subr.bf16.mxu0 0
      %314 = vmatpush1.bf16.msra.mxu0 0
      %315 = vmatprep.subr.bf16.mxu0 0
      %316 = vmatpush1.bf16.msra.mxu0 0
      %317 = vmatprep.subr.bf16.mxu0 0
      %318 = vmatpush1.bf16.msra.mxu0 0
      %319 = vmatprep.subr.bf16.mxu0 0
      %320 = vmatpush1.bf16.msra.mxu0 0
      %321 = vmatprep.subr.bf16.mxu0 0
      %322 = vmatpush1.bf16.msra.mxu0 0
      %323 = vmatprep.subr.bf16.mxu0 0
      %324 = vmatpush1.bf16.msra.mxu0 0
      %325 = vmatprep.subr.bf16.mxu0 0
      %326 = vmatpush1.bf16.msra.mxu0 0
      %327 = vmatprep.subr.bf16.mxu0 0
      %328 = vmatpush1.bf16.msra.mxu0 0
      %329 = vmatprep.subr.bf16.mxu0 0
      %330 = vmatpush1.bf16.msra.mxu0 0
      %331 = vmatprep.subr.bf16.mxu0 0
      %332 = vmatpush1.bf16.msra.mxu0 0
      %333 = vmatprep.subr.bf16.mxu0 0
      %334 = vmatpush1.bf16.msra.mxu0 0
      %335 = vmatprep.subr.bf16.mxu0 0
      %336 = vmatpush1.bf16.msra.mxu0 0
      %337 = vmatprep.subr.bf16.mxu0 0
      %338 = vmatpush1.bf16.msra.mxu0 0
      %339 = vmatprep.subr.bf16.mxu0 0
      %340 = vmatpush1.bf16.msra.mxu0 0
      %341 = vmatprep.mubr.bf16.mxu0 0
      %342 = vmatmul.mubr.bf16.gmra.mrb[0].mxu0 %v307
      %v343 = vpop.f32.mrb[0].mxu0
      %v344 = vadd.f32 %v292, %v343
      %v345 = vpop.f32.mrb[0].mxu0
      %v346 = vpop.f32.mrb[0].mxu0
      %v347 = vadd.f32 %v292, %v346
      %v348 = vpop.f32.mrb[0].mxu0
      %349 = vdwg.mxu0
      %v350 = vpack.c.bf16 %v347, %v344
      %v351 = vtanh.bf16.pop %v350
      %v352 = vld [vmem:[%s3] sm:$0xf]
      %v353 = vld [vmem:[%s3 + $0x4] sm:$0xf]
      %v354 = vld [vmem:[%s3 + $0x8] sm:$0xf]
      %v355 = vld [vmem:[%s3 + $0xc] sm:$0xf]
      %v356 = vld [vmem:[%s3 + $0x10] sm:$0xf]
      %v357 = vld [vmem:[%s3 + $0x14] sm:$0xf]
      %v358 = vld [vmem:[%s3 + $0x18] sm:$0xf]
      %v359 = vld [vmem:[%s3 + $0x1c] sm:$0xf]
      %v360 = vld [vmem:[%s3 + $0x20] sm:$0xf]
      %v361 = vld [vmem:[%s3 + $0x24] sm:$0xf]
      %v362 = vld [vmem:[%s3 + $0x28] sm:$0xf]
      %v363 = vld [vmem:[%s3 + $0x2c] sm:$0xf]
      %v364 = vld [vmem:[%s3 + $0x30] sm:$0xf]
      %v365 = vld [vmem:[%s3 + $0x34] sm:$0xf]
      %v366 = vld [vmem:[%s3 + $0x38] sm:$0xf]
      %v367 = vld [vmem:[%s3 + $0x3c] sm:$0xf]
      %v368 = vld [vmem:[%s4] sm:$0x1]
      %v370 = vlaneseq
      %v371 = vshrl.u32 %v370, 7
      %v372 = vsub.s32 0, %v371
      %v373 = vrot.slane %v368, %v372
      %v391 = vunpack.c.l.b16 %v352
      %v392 = vunpack.c.l.b16 %v353
      %v393 = vunpack.c.l.b16 %v354
      %v394 = vunpack.c.l.b16 %v355
      %v395 = vunpack.c.l.b16 %v356
      %v396 = vunpack.c.l.b16 %v357
      %v397 = vunpack.c.l.b16 %v358
      %v398 = vunpack.c.l.b16 %v359
      %v399 = vunpack.c.l.b16 %v360
      %v400 = vunpack.c.l.b16 %v361
      %v401 = vunpack.c.l.b16 %v362
      %v402 = vunpack.c.l.b16 %v363
      %v403 = vunpack.c.l.b16 %v364
      %v404 = vunpack.c.l.b16 %v365
      %v405 = vunpack.c.l.b16 %v366
      %v406 = vunpack.c.l.b16 %v367
      %v407 = vpack.c.b16 %v392, %v391
      %v408 = vpack.c.b16 %v394, %v393
      %v409 = vpack.c.b16 %v396, %v395
      %v410 = vpack.c.b16 %v398, %v397
      %v411 = vpack.c.b16 %v400, %v399
      %v412 = vpack.c.b16 %v402, %v401
      %v413 = vpack.c.b16 %v404, %v403
      %v414 = vpack.c.b16 %v406, %v405
      %423 = vmatprep.subr.bf16.mxu0 0
      %424 = vmatpush1.bf16.msra.mxu0 %v407
      %425 = vmatprep.subr.bf16.mxu0 0
      %426 = vmatpush1.bf16.msra.mxu0 %v408
      %427 = vmatprep.subr.bf16.mxu0 0
      %428 = vmatpush1.bf16.msra.mxu0 %v409
      %429 = vmatprep.subr.bf16.mxu0 0
      %430 = vmatpush1.bf16.msra.mxu0 %v410
      %431 = vmatprep.subr.bf16.mxu0 0
      %432 = vmatpush1.bf16.msra.mxu0 %v411
      %433 = vmatprep.subr.bf16.mxu0 0
      %434 = vmatpush1.bf16.msra.mxu0 %v412
      %435 = vmatprep.subr.bf16.mxu0 0
      %436 = vmatpush1.bf16.msra.mxu0 %v413
      %437 = vmatprep.subr.bf16.mxu0 0
      %438 = vmatpush1.bf16.msra.mxu0 %v414
      %439 = vmatprep.subr.bf16.mxu0 0
      %440 = vmatpush1.bf16.msra.mxu0 0
      %441 = vmatprep.subr.bf16.mxu0 0
      %442 = vmatpush1.bf16.msra.mxu0 0
      %443 = vmatprep.subr.bf16.mxu0 0
      %444 = vmatpush1.bf16.msra.mxu0 0
      %445 = vmatprep.subr.bf16.mxu0 0
      %446 = vmatpush1.bf16.msra.mxu0 0
      %447 = vmatprep.subr.bf16.mxu0 0
      %448 = vmatpush1.bf16.msra.mxu0 0
      %449 = vmatprep.subr.bf16.mxu0 0
      %450 = vmatpush1.bf16.msra.mxu0 0
      %451 = vmatprep.subr.bf16.mxu0 0
      %452 = vmatpush1.bf16.msra.mxu0 0
      %453 = vmatprep.subr.bf16.mxu0 0
      %454 = vmatpush1.bf16.msra.mxu0 0
      %455 = vmatprep.mubr.bf16.mxu0 0
      %456 = vmatmul.mubr.bf16.gmra.mrb[0].mxu0 %v351
      %v457 = vpop.f32.mrb[0].mxu0
      %v458 = vadd.f32 %v373, %v457
      %v459 = vpop.f32.mrb[0].mxu0
      %v460 = vpop.f32.mrb[0].mxu0
      %v461 = vadd.f32 %v373, %v460
      %v462 = vpop.f32.mrb[0].mxu0
      %463 = vdwg.mxu0
      %v464 = vpack.c.bf16 %v461, %v458
      %v465 = vtanh.bf16.pop %v464
      %v466 = vld [vmem:[%s5] sm:$0xf]
      %v467 = vld [vmem:[%s5 + $0x4] sm:$0xf]
      %v468 = vld [vmem:[%s5 + $0x8] sm:$0xf]
      %v469 = vld [vmem:[%s5 + $0xc] sm:$0xf]
      %v470 = vld [vmem:[%s5 + $0x10] sm:$0xf]
      %v471 = vld [vmem:[%s5 + $0x14] sm:$0xf]
      %v472 = vld [vmem:[%s5 + $0x18] sm:$0xf]
      %v473 = vld [vmem:[%s5 + $0x1c] sm:$0xf]
      %v474 = vld [vmem:[%s5 + $0x20] sm:$0xf]
      %v475 = vld [vmem:[%s5 + $0x24] sm:$0xf]
      %v476 = vld [vmem:[%s5 + $0x28] sm:$0xf]
      %v477 = vld [vmem:[%s5 + $0x2c] sm:$0xf]
      %v478 = vld [vmem:[%s5 + $0x30] sm:$0xf]
      %v479 = vld [vmem:[%s5 + $0x34] sm:$0xf]
      %v480 = vld [vmem:[%s5 + $0x38] sm:$0xf]
      %v481 = vld [vmem:[%s5 + $0x3c] sm:$0xf]
      %v482 = vld [vmem:[%s6] sm:$0x1]
      %v484 = vlaneseq
      %v485 = vshrl.u32 %v484, 7
      %v486 = vsub.s32 0, %v485
      %v487 = vrot.slane %v482, %v486
      %v505 = vunpack.c.l.b16 %v466
      %v506 = vunpack.c.l.b16 %v467
      %v507 = vunpack.c.l.b16 %v468
      %v508 = vunpack.c.l.b16 %v469
      %v509 = vunpack.c.l.b16 %v470
      %v510 = vunpack.c.l.b16 %v471
      %v511 = vunpack.c.l.b16 %v472
      %v512 = vunpack.c.l.b16 %v473
      %v513 = vunpack.c.l.b16 %v474
      %v514 = vunpack.c.l.b16 %v475
      %v515 = vunpack.c.l.b16 %v476
      %v516 = vunpack.c.l.b16 %v477
      %v517 = vunpack.c.l.b16 %v478
      %v518 = vunpack.c.l.b16 %v479
      %v519 = vunpack.c.l.b16 %v480
      %v520 = vunpack.c.l.b16 %v481
      %v521 = vpack.c.b16 %v506, %v505
      %v522 = vpack.c.b16 %v508, %v507
      %v523 = vpack.c.b16 %v510, %v509
      %v524 = vpack.c.b16 %v512, %v511
      %v525 = vpack.c.b16 %v514, %v513
      %v526 = vpack.c.b16 %v516, %v515
      %v527 = vpack.c.b16 %v518, %v517
      %v528 = vpack.c.b16 %v520, %v519
      %537 = vmatprep.subr.bf16.mxu0 0
      %538 = vmatpush1.bf16.msra.mxu0 %v521
      %539 = vmatprep.subr.bf16.mxu0 0
      %540 = vmatpush1.bf16.msra.mxu0 %v522
      %541 = vmatprep.subr.bf16.mxu0 0
      %542 = vmatpush1.bf16.msra.mxu0 %v523
      %543 = vmatprep.subr.bf16.mxu0 0
      %544 = vmatpush1.bf16.msra.mxu0 %v524
      %545 = vmatprep.subr.bf16.mxu0 0
      %546 = vmatpush1.bf16.msra.mxu0 %v525
      %547 = vmatprep.subr.bf16.mxu0 0
      %548 = vmatpush1.bf16.msra.mxu0 %v526
      %549 = vmatprep.subr.bf16.mxu0 0
      %550 = vmatpush1.bf16.msra.mxu0 %v527
      %551 = vmatprep.subr.bf16.mxu0 0
      %552 = vmatpush1.bf16.msra.mxu0 %v528
      %553 = vmatprep.subr.bf16.mxu0 0
      %554 = vmatpush1.bf16.msra.mxu0 0
      %555 = vmatprep.subr.bf16.mxu0 0
      %556 = vmatpush1.bf16.msra.mxu0 0
      %557 = vmatprep.subr.bf16.mxu0 0
      %558 = vmatpush1.bf16.msra.mxu0 0
      %559 = vmatprep.subr.bf16.mxu0 0
      %560 = vmatpush1.bf16.msra.mxu0 0
      %561 = vmatprep.subr.bf16.mxu0 0
      %562 = vmatpush1.bf16.msra.mxu0 0
      %563 = vmatprep.subr.bf16.mxu0 0
      %564 = vmatpush1.bf16.msra.mxu0 0
      %565 = vmatprep.subr.bf16.mxu0 0
      %566 = vmatpush1.bf16.msra.mxu0 0
      %567 = vmatprep.subr.bf16.mxu0 0
      %568 = vmatpush1.bf16.msra.mxu0 0
      %569 = vmatprep.mubr.bf16.mxu0 0
      %570 = vmatmul.mubr.bf16.gmra.mrb[0].mxu0 %v465
      %v571 = vpop.f32.mrb[0].mxu0
      %v572 = vadd.f32 %v487, %v571
      %v573 = vpop.f32.mrb[0].mxu0
      %v574 = vpop.f32.mrb[0].mxu0
      %v575 = vadd.f32 %v487, %v574
      %v576 = vpop.f32.mrb[0].mxu0
      %577 = vdwg.mxu0
      %vm578 = vcmask 64512
      %579 = vst.msk [vmem:[%s280] sm:$0xff] %vm578, %v572
      %580 = vst.msk [vmem:[%s280 + $0x8] sm:$0xff] %vm578, %v575
      %s581 = smul.u32 2, %s18
      %p582 = scmp.lt.s32.totalorder %s581, 3
      %s583 = scalar_select %p582, %s581, 3
      %s584 = smul.addr %s583, 8
      %s585 = scalar_lea.vmem %s7, %s584
      // Predicated region
      $region49: #{_qnet_forward_impl.1} parent=47 // pred_check
        %p586 = pneg %p188
      $region50: #{_qnet_forward_impl.1} parent=47 // pred_check_branch
        %588 = sbr.rel (%p586) target = $region52
      $region51: #{_qnet_forward_impl.1} parent=47 // pred_region
        %s589 = smul.u32 2, %s18
      $region52: #{_qnet_forward_impl.1} parent=47 // pred_fallthru
        _
    $region48: #{_qnet_forward_impl.1} parent=5 // pred_fallthru
      _
    %p590 = scmp.le.s32.totalorder 2, %s13
    // Predicated region
    $region53: #{_qnet_forward_impl.1} parent=5 // pred_check
      %p591 = pneg %p590
    $region54: #{_qnet_forward_impl.1} parent=5 // pred_check_branch
      %593 = sbr.rel (%p591) target = $region56
    $region55: #{_qnet_forward_impl.1} parent=5 // pred_region
      %s594 = ssub.s32 %s13, 2
      // Predicated region
      $region57: #{_qnet_forward_impl.1} parent=55 // pred_check
        %p595 = pneg %p194
      $region58: #{_qnet_forward_impl.1} parent=55 // pred_check_branch
        %597 = sbr.rel (%p595) target = $region60
      $region59: #{_qnet_forward_impl.1} parent=55 // pred_region
        %s598 = smul.u32 2, %s19
        %p599 = scmp.lt.s32.totalorder %s598, 3
        %s600 = scalar_select %p599, %s598, 3
        %s601 = smul.addr %s600, 8
        %s602 = scalar_lea.vmem %s7, %s601
      $region60: #{_qnet_forward_impl.1} parent=55 // pred_fallthru
        _
    $region56: #{_qnet_forward_impl.1} parent=5 // pred_fallthru
      _
  $region6: #{_qnet_forward_impl.1} parent=0 // loop_footer
    %s17 = sadd.s32 1, %s13
  $region7: #{_qnet_forward_impl.1} parent=0 // loop_footer_branch
    %12 = sbr.rel target = $region3
  $region8: #{_qnet_forward_impl.1} parent=0 // loop_exit
    _

</llo_original>
